<compile_context>
chip_gen: v5e
topology: v5e:2x2
jax: 0.10.0
libtpu: 0.0.40
codegen_flags: <defaults>
</compile_context>

<pallas_src>
import jax
import jax.numpy as jnp
from jax.experimental import pallas as pl
from jax.experimental.pallas import tpu as pltpu

BN_EPS = 1e-5


def _detect_roll_sign():
    """Return +1 if pltpu.roll follows jnp.roll convention (elem i -> i+shift), else -1."""
    def k(x_ref, o_ref):
        o_ref[...] = pltpu.roll(x_ref[...], 1, axis=1)

    x = jnp.broadcast_to(jnp.arange(128, dtype=jnp.float32), (8, 128))
    y = pl.pallas_call(k, out_shape=jax.ShapeDtypeStruct((8, 128), jnp.float32))(x)
    return 1 if float(y[0, 0]) == 127.0 else -1


def _grid_steps(n):
    """1 step on v5e/v6e (1 TensorCore); 2 steps on v7x (2 TensorCores) when possible."""
    try:
        kind = jax.devices()[0].device_kind.lower()
    except Exception:
        kind = ""
    if "v7" in kind and n >= 2 and n % 2 == 0:
        return 2
    return 1


def _make_fused_kernel(cin, cout, h, w, b, roll_sign):
    hw = h * w
    bhw = b * hw
    pow2 = (h & (h - 1)) == 0 and (w & (w - 1)) == 0

    def kernel(x_ref, w1_ref, w2_ref, sh_ref, o_ref):
        # Per-lane (row, col) coordinates inside each image; batch is tiled along lanes.
        lane = jax.lax.broadcasted_iota(jnp.int32, (1, bhw), 1)
        if pow2:
            cc = lane & (w - 1)
            rr = (lane >> (w.bit_length() - 1)) & (h - 1)
        else:
            # TODO(synk): vector int div/rem fallback (untested path; example uses pow2 dims).
            p = lane % hw
            cc = p % w
            rr = p // w

        def tap_mask(dh, dw):
            # Validity mask (as f32 0/1) of the 3x3 tap (dh, dw); None for the center tap.
            m = None
            if dh == 0:
                m = rr >= 1
            elif dh == 2:
                m = rr < (h - 1)
            if dw == 0:
                m = (cc >= 1) if m is None else jnp.logical_and(m, cc >= 1)
            elif dw == 2:
                m = (cc < (w - 1)) if m is None else jnp.logical_and(m, cc < (w - 1))
            return None if m is None else jnp.where(m, 1.0, 0.0)

        def im2col(act):
            # act: (C, B*hw) f32 -> (9*C, B*hw) bf16, K ordered (dh, dw, ci).
            taps = []
            for dh in range(3):
                for dw in range(3):
                    shift = (roll_sign * ((1 - dh) * w + (1 - dw))) % bhw
                    rolled = act if shift == 0 else pltpu.roll(act, shift, axis=1)
                    m = tap_mask(dh, dw)
                    tap = rolled if m is None else rolled * m
                    taps.append(tap.astype(jnp.bfloat16))
            return jnp.concatenate(taps, axis=0)

        # Pack the B images of this step side by side on the lane axis: (cin, B*hw).
        if b == 1:
            xcat = x_ref[0]
        else:
            xcat = jnp.concatenate([x_ref[i] for i in range(b)], axis=1)

        sh = sh_ref[...]                                     # (cout, 2) f32

        # block1: conv3x3 (BN scale folded into weights) -> +shift -> ReLU -> Dropout(id)
        y1 = jnp.dot(w1_ref[...], im2col(xcat),
                     preferred_element_type=jnp.float32)     # (cout, B*hw) f32, one matmul
        y1 = jnp.maximum(y1 + sh[:, 0:1], 0.0)
        # TODO(synk): Dropout is identity in eval mode; training-mode masking not implemented.

        # block2 = BasicBlock(cout, 1 layer): out = y1 + relu(conv(y1) + shift2)
        y2 = jnp.dot(w2_ref[...], im2col(y1),
                     preferred_element_type=jnp.float32)     # (cout, B*hw) f32
        y2 = jnp.maximum(y2 + sh[:, 1:2], 0.0)

        out = (y1 + y2).astype(o_ref.dtype)
        for i in range(b):                                   # lane-dense (256-wide) stores
            o_ref[i] = out[:, i * hw:(i + 1) * hw]

    return kernel


def make_forward(roll_sign):
    @jax.jit
    def forward(x_nchw, params):
        n, cin, h, w = x_nchw.shape
        cout = params["w1_2d"].shape[0]
        hw = h * w
        steps = _grid_steps(n)
        b = n // steps
        xf = x_nchw.reshape(n, cin, hw)          # flatten spatial onto lanes (no transpose)

        out = pl.pallas_call(
            _make_fused_kernel(cin, cout, h, w, b, roll_sign),
            out_shape=jax.ShapeDtypeStruct((n, cout, hw), x_nchw.dtype),
            grid=(steps,),
            in_specs=[
                pl.BlockSpec((b, cin, hw), lambda i: (i, 0, 0)),      # B images per step
                pl.BlockSpec((cout, 9 * cin), lambda i: (0, 0)),      # folded w1 (bf16)
                pl.BlockSpec((cout, 9 * cout), lambda i: (0, 0)),     # folded w2 (bf16)
                pl.BlockSpec((cout, 2), lambda i: (0, 0)),            # [shift1 | shift2]
            ],
            out_specs=pl.BlockSpec((b, cout, hw), lambda i: (i, 0, 0)),
            compiler_params=pltpu.CompilerParams(
                dimension_semantics=("parallel",)),
        )(xf, params["w1_2d"], params["w2_2d"], params["shifts"])
        return out.reshape(n, cout, h, w)

    return forward


def fold_bn(gamma, beta, running_mean, running_var, eps=BN_EPS):
    scale = gamma / jnp.sqrt(running_var + eps)
    return scale, beta - running_mean * scale


def init_params(key, inchannel, outchannel):
    k1, k2, k3, k4 = jax.random.split(key, 4)
    # Conv weights in HWIO = (kh, kw, cin, cout) (PyTorch OIHW transposed).
    w1 = 0.1 * jax.random.normal(k1, (3, 3, inchannel, outchannel), jnp.float32)
    w2 = 0.1 * jax.random.normal(k2, (3, 3, outchannel, outchannel), jnp.float32)
    # Deterministic, non-trivial BatchNorm params / running stats (eval mode).
    g1 = 1.0 + 0.05 * jax.random.normal(k3, (outchannel,), jnp.float32)
    b1 = 0.02 * jnp.arange(outchannel, dtype=jnp.float32)
    m1 = 0.01 * jnp.arange(outchannel, dtype=jnp.float32)
    v1 = 1.0 + 0.1 * jnp.arange(outchannel, dtype=jnp.float32) / outchannel
    g2 = 1.0 + 0.05 * jax.random.normal(k4, (outchannel,), jnp.float32)
    b2 = -0.01 * jnp.arange(outchannel, dtype=jnp.float32)
    m2 = 0.005 * jnp.arange(outchannel, dtype=jnp.float32)
    v2 = 1.0 + 0.05 * jnp.arange(outchannel, dtype=jnp.float32) / outchannel
    s1, sh1 = fold_bn(g1, b1, m1, v1)
    s2, sh2 = fold_bn(g2, b2, m2, v2)
    # Fold BN scale into the f32 conv weights, then quantize ONCE to bf16.
    w1_fold = (w1 * s1).astype(jnp.bfloat16)                  # (3,3,cin,cout)
    w2_fold = (w2 * s2).astype(jnp.bfloat16)
    # Kernel matmul weights: (Cout, 9*Cin), K ordered (dh, dw, ci) to match im2col.
    w1_2d = w1_fold.reshape(9 * inchannel, outchannel).T
    w2_2d = w2_fold.reshape(9 * outchannel, outchannel).T
    shifts = jnp.stack([sh1, sh2], axis=1)                    # (cout, 2) f32
    return dict(w1_fold_hwio=w1_fold, w2_fold_hwio=w2_fold,
                w1_2d=w1_2d, w2_2d=w2_2d,
                shift1=sh1, shift2=sh2, shifts=shifts)


def reference_forward(x_nchw, params):
    """Plain-JAX reference with identical eval-mode + folded-bf16-weight semantics."""
    def cbr(x_nhwc, w_hwio, shift):
        y = jax.lax.conv_general_dilated(
            x_nhwc.astype(jnp.bfloat16), w_hwio,
            window_strides=(1, 1), padding="SAME",
            dimension_numbers=("NHWC", "HWIO", "NHWC"),
            preferred_element_type=jnp.float32)
        return jnp.maximum(y + shift, 0.0)

    x = jnp.transpose(x_nchw, (0, 2, 3, 1))
    y1 = cbr(x, params["w1_fold_hwio"], params["shift1"])
    out = y1 + cbr(y1, params["w2_fold_hwio"], params["shift2"])
    return jnp.transpose(out, (0, 3, 1, 2))


if __name__ == "__main__":
    key = jax.random.PRNGKey(0)
    kx, kp = jax.random.split(key)

    N, Cin, H, W = 2, 4, 16, 16
    Cout = 8
    x = jax.random.normal(kx, (N, Cin, H, W), jnp.float32)   # PyTorch NCHW input
    params = init_params(kp, Cin, Cout)

    roll_sign = _detect_roll_sign()          # pin pltpu.roll direction on this backend
    forward = make_forward(roll_sign)

    out = jax.block_until_ready(forward(x, params))
    assert out.shape == (N, Cout, H, W), out.shape

    ref = jax.block_until_ready(reference_forward(x, params))
    err = float(jnp.max(jnp.abs(out - ref)))
    assert jnp.allclose(out, ref, rtol=1e-2, atol=1e-2), err

    print("KERNEL_OK")
</pallas_src>

<mosaic_0001>
module attributes {stable_mosaic.version = 11 : i64} {
  func.func @k(%arg0: memref<8x128xf32, #tpu.memory_space<vmem>>, %arg1: memref<8x128xf32, #tpu.memory_space<vmem>>) attributes {dimension_semantics = [], scalar_prefetch = 0 : i64, scratch_operands = 0 : i64, tpu.core_type = #tpu.core_type<tc>} {
    %c0 = arith.constant 0 : index
    %c0_0 = arith.constant 0 : index
    %0 = vector.load %arg0[%c0, %c0_0] : memref<8x128xf32, #tpu.memory_space<vmem>>, vector<8x128xf32>
    %c1_i32 = arith.constant 1 : i32
    %1 = tpu.dynamic_rotate %0 by %c1_i32 dim 1 : vector<8x128xf32>, i32 -> vector<8x128xf32>
    %c0_1 = arith.constant 0 : index
    %c0_2 = arith.constant 0 : index
    %2 = vector.load %arg1[%c0_1, %c0_2] : memref<8x128xf32, #tpu.memory_space<vmem>>, vector<8x128xf32>
    tpu.vector_store %arg1[%c0_1, %c0_2], %1 {strides = array<i32>} : memref<8x128xf32, #tpu.memory_space<vmem>>, vector<8x128xf32>,
    return
  }
}

</mosaic_0001>

<llo_original>
// kernel: tpu_custom_call.1
$region0: #{tpu_custom_call.1}
  #allocation0 [shape = 'u32[]', space=smem, size = 0x4, offset = 0x4, fixed_abs, tag = 'smem constant byte address 0x4 - core index']
  #allocation1 [shape = 'u32[72,128]{1,0:T(1,128)}', space=vmem, size = 0x9000, scoped, tag = 'internal scratch']
  %s0 = inlined_call_operand.hbm [shape: f32[8,128], index: 0, kind: input, shape index: {}]
  %s1 = inlined_call_operand.hbm [shape: f32[8,128], index: 1, kind: output, shape index: {}]
  %s2 = sld [smem:[#allocation0]]
  $region18: #{tpu_custom_call.1} parent=0
    _
  %s4 = ssub.s32 1, %s2
  %s5 = scalar_select 0, %s4, %s2
  $region1: #{tpu_custom_call.1} parent=0
    #allocation2 [shape = 'u8[4096]{0}', space=vmem, size = 0x1000, scoped, tag = 'input window, operand 0, single buffered']
    #allocation3 [shape = 's32[1]{0}', space=sflag, size = 0x4, scoped, tag = 'scoped memory for tpu_custom_call.1']
    #allocation4 [shape = 's32[1]{0}', space=sflag, size = 0x4, scoped, tag = 'scoped memory for tpu_custom_call.1']
    #allocation5 [shape = 'u8[4096]{0}', space=vmem, size = 0x1000, scoped, tag = 'output window, operand 0, single buffered']
    %6 = vsyncpa [#allocation3], 0
    %7 = vsyncpa [#allocation4], 0
    // Predicated region
    $region2: #{tpu_custom_call.1} parent=1 // pred_check
      _
    $region3: #{tpu_custom_call.1} parent=1 // pred_check_branch
      %9 = sbr.rel (0) target = $region5
    $region4: #{tpu_custom_call.1} parent=1 // pred_region
      %11 = vsyncadd [#allocation3], 0
      %s13 = sshll.u32 %s0, 4
      %s14 = int_to_ptr.hbm [resolvable:$true] %s13
      %s15 = sshll.u32 [#allocation2], 4
      %s16 = int_to_ptr.vmem [resolvable:$true] %s15
      %18 = dma.hbm_to_vmem [thread:$0]  %s14, 128, %s16, [#allocation3]
    $region5: #{tpu_custom_call.1} parent=1 // pred_fallthru
      _
    // Predicated region
    $region6: #{tpu_custom_call.1} parent=1 // pred_check
      _
    $region7: #{tpu_custom_call.1} parent=1 // pred_check_branch
      %20 = sbr.rel (0) target = $region9
    $region8: #{tpu_custom_call.1} parent=1 // pred_region
      %22 = dma.done [#allocation3], 128
    $region9: #{tpu_custom_call.1} parent=1 // pred_fallthru
      _
    %v23 = vld [vmem:[#allocation2] sm:$0xff]
    %24 = vrot.lane.b32.xlu0 %v23, 1
    %v25 = vpop.permute.xlu0 %24
    %26 = vst [vmem:[#allocation5] sm:$0xff] %v25
    // Predicated region
    $region10: #{tpu_custom_call.1} parent=1 // pred_check
      _
    $region11: #{tpu_custom_call.1} parent=1 // pred_check_branch
      %28 = sbr.rel (0) target = $region13
    $region12: #{tpu_custom_call.1} parent=1 // pred_region
      %30 = vsyncadd [#allocation4], 0
      %s32 = sshll.u32 [#allocation5], 4
      %s33 = int_to_ptr.vmem [resolvable:$true] %s32
      %s34 = sshll.u32 %s1, 4
      %s35 = int_to_ptr.hbm [resolvable:$true] %s34
      %37 = dma.vmem_to_hbm [thread:$0]  %s33, 128, %s35, [#allocation4]
    $region13: #{tpu_custom_call.1} parent=1 // pred_fallthru
      _
    // Predicated region
    $region14: #{tpu_custom_call.1} parent=1 // pred_check
      _
    $region15: #{tpu_custom_call.1} parent=1 // pred_check_branch
      %39 = sbr.rel (0) target = $region17
    $region16: #{tpu_custom_call.1} parent=1 // pred_region
      %41 = dma.done [#allocation4], 128
    $region17: #{tpu_custom_call.1} parent=1 // pred_fallthru
      _
    %42 = vsyncpa [#allocation3], 1
    %43 = vsyncpa [#allocation4], 1

</llo_original>
